<compile_context>
chip_gen: v5e
topology: v5e:2x2
jax: 0.10.0
libtpu: 0.0.40
codegen_flags: <defaults>
</compile_context>

<pallas_src>
import functools

import jax
import jax.numpy as jnp
from jax.experimental import pallas as pl
from jax.experimental.pallas import tpu as pltpu

LANES = 128
SUBLANES = 8
DEFAULT_TILE_ROWS = 4096      # (4096, 128) f32 block = 2 MiB
NUM_SPLITS = 2                # leading 'parallel' axis (v7x has 2 TensorCores)


def _bce_sum_kernel(pred_ref, targ_ref, out_ref, *, steps, tile_rows, rows,
                    binary_target):
    c = pl.program_id(0)
    i = pl.program_id(1)

    @pl.when(i == 0)
    def _init():
        out_ref[...] = jnp.zeros_like(out_ref)

    tile_idx = c * steps + i
    valid = rows - tile_idx * tile_rows   # rows of this tile that lie inside the array

    def accumulate(p, t):
        if binary_target:
            # Exact for hard 0/1 targets: a single EUP log per element.
            x = jnp.where(t >= 0.5, p, 1.0 - p)
            loss = -jnp.maximum(jnp.log(x), jnp.float32(-100.0))
        else:
            # nn.BCELoss clamps each log term at -100 BEFORE the multiply
            # (keeps 0 * clamp finite; also makes the neutral pad exactly 0).
            log_p = jnp.maximum(jnp.log(p), jnp.float32(-100.0))
            log_1mp = jnp.maximum(jnp.log(1.0 - p), jnp.float32(-100.0))
            loss = -(log_1mp + t * (log_p - log_1mp))
        # Fold (tile_rows, 128) -> (8, 128): vreg-aligned, pure VPU adds, no XLU.
        out_ref[...] += loss.reshape(tile_rows // SUBLANES, SUBLANES, LANES).sum(axis=0)

    @pl.when(valid >= tile_rows)          # common case: fully valid tile
    def _full():
        accumulate(pred_ref[...].astype(jnp.float32),
                   targ_ref[...].astype(jnp.float32))

    @pl.when(jnp.logical_and(valid > 0, valid < tile_rows))   # ragged last tile
    def _ragged():
        row_ids = jax.lax.broadcasted_iota(jnp.int32, (tile_rows, LANES), 0)
        keep = row_ids < valid
        # Neutralise out-of-bounds rows BEFORE the log: pred=target=1 gives
        # exactly zero loss under the -100 clamp (never NaN/Inf).
        p = jnp.where(keep, pred_ref[...].astype(jnp.float32), jnp.float32(1.0))
        t = jnp.where(keep, targ_ref[...].astype(jnp.float32), jnp.float32(1.0))
        accumulate(p, t)
    # valid <= 0: idle overhang step (only reachable for huge inputs); skipped.


@functools.partial(jax.jit,
                   static_argnames=("reduction", "binary_target", "max_tile_rows"))
def multibit_bce_loss(pred, target, reduction: str = "mean",
                      binary_target: bool = False,
                      max_tile_rows: int = DEFAULT_TILE_ROWS):
    """BCE loss over multi-bit predictions, matching nn.BCELoss semantics."""
    assert pred.shape == target.shape
    n = pred.size  # static
    assert n > 0

    flat_p = pred.reshape(-1)   # contiguous reshape: free
    flat_t = target.reshape(-1)

    # Tiny neutral pad (pred=target=1 -> exactly 0 loss) only when required:
    #   - very small inputs (< 16 rows): pad to a whole (8,128) tile so a block
    #     never exceeds the array (pad <= 4 KiB, negligible);
    #   - otherwise only lane alignment when n % 128 != 0 (rare fallback).
    if n < 2 * SUBLANES * LANES:
        pad = (-n) % (SUBLANES * LANES)
    else:
        pad = (-n) % LANES
    if pad:
        flat_p = jnp.concatenate([flat_p, jnp.ones((pad,), flat_p.dtype)])
        flat_t = jnp.concatenate([flat_t, jnp.ones((pad,), flat_t.dtype)])

    rows = (n + pad) // LANES
    p2 = flat_p.reshape(rows, LANES)
    t2 = flat_t.reshape(rows, LANES)

    # Tiling: n_splits * steps tiles of tile_rows (multiple of 8, <= rows) cover
    # the rows; only the very last tile is ragged and is masked in-kernel.
    n_splits = NUM_SPLITS if rows >= 2 * SUBLANES else 1
    steps = pl.cdiv(rows, n_splits * max_tile_rows)
    n_tiles = n_splits * steps
    tile_rows = pl.cdiv(pl.cdiv(rows, n_tiles), SUBLANES) * SUBLANES
    n_valid_tiles = pl.cdiv(rows, tile_rows)

    def in_map(c, i):
        # Clamp keeps any (huge-input-only) idle overhang step in bounds; the
        # kernel skips its compute via the `valid <= 0` case.
        return (jnp.minimum(c * steps + i, n_valid_tiles - 1), 0)

    kernel = functools.partial(_bce_sum_kernel, steps=steps, tile_rows=tile_rows,
                               rows=rows, binary_target=binary_target)

    partials = pl.pallas_call(
        kernel,
        out_shape=jax.ShapeDtypeStruct((n_splits * SUBLANES, LANES), jnp.float32),
        grid_spec=pltpu.PrefetchScalarGridSpec(
            num_scalar_prefetch=0,
            grid=(n_splits, steps),
            in_specs=[
                pl.BlockSpec((tile_rows, LANES), in_map),
                pl.BlockSpec((tile_rows, LANES), in_map),
            ],
            out_specs=pl.BlockSpec((SUBLANES, LANES), lambda c, i: (c, 0)),
        ),
        compiler_params=pltpu.CompilerParams(
            # TODO(synk): if profiling shows a single TensorCore running the
            # whole grid on v7x, switch the first axis to pltpu.CORE_PARALLEL.
            dimension_semantics=("parallel", "arbitrary"),
            vmem_limit_bytes=32 * 1024 * 1024,
        ),
    )(p2, t2)

    total = jnp.sum(partials)
    if reduction == "mean":
        return total / jnp.float32(n)
    elif reduction == "sum":
        return total
    else:
        raise ValueError(f"unsupported reduction: {reduction}")
    # TODO(synk): reduction='none' (elementwise output) not implemented; the
    # module only uses the default 'mean'.


def _reference_bce(pred, target, reduction: str = "mean"):
    p = pred.astype(jnp.float32)
    t = target.astype(jnp.float32)
    log_p = jnp.maximum(jnp.log(p), -100.0)
    log_1mp = jnp.maximum(jnp.log(1.0 - p), -100.0)
    loss = -(t * log_p + (1.0 - t) * log_1mp)
    return jnp.mean(loss) if reduction == "mean" else jnp.sum(loss)


if __name__ == "__main__":
    key = jax.random.PRNGKey(0)
    BITS = 24

    # Test 1: shapes implied by the module, pred/target [B, N, 24] (tiny path).
    B, N = 2, 8
    k1, k2, key = jax.random.split(key, 3)
    pred = jnp.clip(jax.random.uniform(k1, (B, N, BITS), dtype=jnp.float32),
                    1e-6, 1.0 - 1e-6)
    target = (jax.random.uniform(k2, (B, N, BITS)) > 0.5).astype(jnp.float32)
    loss = jax.block_until_ready(multibit_bce_loss(pred, target))
    ref = jax.block_until_ready(_reference_bce(pred, target))
    assert jnp.allclose(loss, ref, rtol=1e-5, atol=1e-6), (loss, ref)

    # Test 2: forces multi-tile grid (tiny max_tile_rows), lane pad, in-kernel
    # ragged-tail masking, idle-overhang skip, 2-way split, single-log
    # binary-target fast path.
    k1, k2, key = jax.random.split(key, 3)
    pred2 = jnp.clip(jax.random.uniform(k1, (2, 123, BITS), dtype=jnp.float32),
                     1e-6, 1.0 - 1e-6)
    target2 = (jax.random.uniform(k2, (2, 123, BITS)) > 0.5).astype(jnp.float32)
    loss2 = jax.block_until_ready(
        multibit_bce_loss(pred2, target2, binary_target=True, max_tile_rows=16))
    ref2 = jax.block_until_ready(_reference_bce(pred2, target2))
    assert jnp.allclose(loss2, ref2, rtol=1e-5, atol=1e-6), (loss2, ref2)

    # Test 3: moderate size, no padding (n % 128 == 0), default tiling, ragged
    # last tile, soft targets through the two-log path.
    k1, k2, key = jax.random.split(key, 3)
    pred3 = jnp.clip(jax.random.uniform(k1, (4, 1200, BITS), dtype=jnp.float32),
                     1e-6, 1.0 - 1e-6)
    target3 = jax.random.uniform(k2, (4, 1200, BITS), dtype=jnp.float32)
    loss3 = jax.block_until_ready(multibit_bce_loss(pred3, target3))
    ref3 = jax.block_until_ready(_reference_bce(pred3, target3))
    assert jnp.allclose(loss3, ref3, rtol=1e-5, atol=1e-6), (loss3, ref3)

    print("KERNEL_OK")
</pallas_src>

<mosaic_0001>
module attributes {stable_mosaic.version = 11 : i64} {
  func.func @_bce_sum_kernel(%arg0: i32, %arg1: i32, %arg2: memref<8x128xf32, #tpu.memory_space<vmem>>, %arg3: memref<8x128xf32, #tpu.memory_space<vmem>>, %arg4: memref<8x128xf32, #tpu.memory_space<vmem>>) attributes {dimension_semantics = [#tpu.dimension_semantics<parallel>, #tpu.dimension_semantics<arbitrary>], iteration_bounds = array<i64: 1, 1>, scalar_prefetch = 0 : i64, scratch_operands = 0 : i64, tpu.core_type = #tpu.core_type<tc>, window_params = [{transform_indices = @transform_0, window_bounds = array<i64: 8, 128>}, {transform_indices = @transform_1, window_bounds = array<i64: 8, 128>}, {transform_indices = @transform_2, window_bounds = array<i64: 8, 128>}]} {
    %c0_i32 = arith.constant 0 : i32
    %0 = arith.cmpi eq, %arg1, %c0_i32 : i32
    %1 = arith.extui %0 : i1 to i32
    %c0_i32_0 = arith.constant 0 : i32
    %2 = arith.cmpi ne, %1, %c0_i32_0 : i32
    scf.if %2 {
      %cst = arith.constant 0.000000e+00 : f32
      %15 = vector.broadcast %cst : f32 to vector<8x128xf32>
      %c0 = arith.constant 0 : index
      %c0_7 = arith.constant 0 : index
      %16 = vector.load %arg4[%c0, %c0_7] : memref<8x128xf32, #tpu.memory_space<vmem>>, vector<8x128xf32>
      tpu.vector_store %arg4[%c0, %c0_7], %15 {strides = array<i32>} : memref<8x128xf32, #tpu.memory_space<vmem>>, vector<8x128xf32>,
    } else {
    }
    %c1_i32 = arith.constant 1 : i32
    %3 = arith.muli %arg0, %c1_i32 : i32
    %4 = arith.addi %3, %arg1 : i32
    %c8_i32 = arith.constant 8 : i32
    %5 = arith.muli %4, %c8_i32 : i32
    %c8_i32_1 = arith.constant 8 : i32
    %6 = arith.subi %c8_i32_1, %5 : i32
    %c8_i32_2 = arith.constant 8 : i32
    %7 = arith.cmpi sge, %6, %c8_i32_2 : i32
    %8 = arith.extui %7 : i1 to i32
    %c0_i32_3 = arith.constant 0 : i32
    %9 = arith.cmpi ne, %8, %c0_i32_3 : i32
    scf.if %9 {
      %c0 = arith.constant 0 : index
      %c0_7 = arith.constant 0 : index
      %15 = vector.load %arg2[%c0, %c0_7] : memref<8x128xf32, #tpu.memory_space<vmem>>, vector<8x128xf32>
      %c0_8 = arith.constant 0 : index
      %c0_9 = arith.constant 0 : index
      %16 = vector.load %arg3[%c0_8, %c0_9] : memref<8x128xf32, #tpu.memory_space<vmem>>, vector<8x128xf32>
      %17 = math.log %15 : vector<8x128xf32>
      %cst = arith.constant -1.000000e+02 : f32
      %18 = vector.broadcast %cst : f32 to vector<8x128xf32>
      %19 = arith.maximumf %17, %18 : vector<8x128xf32>
      %cst_10 = arith.constant 1.000000e+00 : f32
      %20 = vector.broadcast %cst_10 : f32 to vector<8x128xf32>
      %21 = arith.subf %20, %15 : vector<8x128xf32>
      %22 = math.log %21 : vector<8x128xf32>
      %cst_11 = arith.constant -1.000000e+02 : f32
      %23 = vector.broadcast %cst_11 : f32 to vector<8x128xf32>
      %24 = arith.maximumf %22, %23 : vector<8x128xf32>
      %25 = arith.subf %19, %24 : vector<8x128xf32>
      %26 = arith.mulf %16, %25 : vector<8x128xf32>
      %27 = arith.addf %24, %26 : vector<8x128xf32>
      %cst_12 = arith.constant 0.000000e+00 : f32
      %28 = vector.broadcast %cst_12 : f32 to vector<8x128xf32>
      %29 = arith.subf %28, %27 : vector<8x128xf32>
      %c0_13 = arith.constant 0 : index
      %c0_14 = arith.constant 0 : index
      %30 = vector.load %arg4[%c0_13, %c0_14] : memref<8x128xf32, #tpu.memory_space<vmem>>, vector<8x128xf32>
      %31 = vector.shape_cast %29 : vector<8x128xf32> to vector<1x8x128xf32>
      %cst_15 = arith.constant dense<0.000000e+00> : vector<8x128xf32>
      %32 = vector.multi_reduction <add>, %31, %cst_15 [0] : vector<1x8x128xf32> to vector<8x128xf32>
      %33 = arith.addf %30, %32 : vector<8x128xf32>
      %c0_16 = arith.constant 0 : index
      %c0_17 = arith.constant 0 : index
      %34 = vector.load %arg4[%c0_16, %c0_17] : memref<8x128xf32, #tpu.memory_space<vmem>>, vector<8x128xf32>
      tpu.vector_store %arg4[%c0_16, %c0_17], %33 {strides = array<i32>} : memref<8x128xf32, #tpu.memory_space<vmem>>, vector<8x128xf32>,
    } else {
    }
    %c0_i32_4 = arith.constant 0 : i32
    %10 = arith.cmpi sgt, %6, %c0_i32_4 : i32
    %c8_i32_5 = arith.constant 8 : i32
    %11 = arith.cmpi slt, %6, %c8_i32_5 : i32
    %12 = arith.andi %10, %11 : i1
    %13 = arith.extui %12 : i1 to i32
    %c0_i32_6 = arith.constant 0 : i32
    %14 = arith.cmpi ne, %13, %c0_i32_6 : i32
    scf.if %14 {
      %15 = tpu.iota {dimensions = array<i32: 0>} : vector<8x128xi32>
      %16 = vector.broadcast %6 : i32 to vector<8x128xi32>
      %17 = arith.cmpi slt, %15, %16 : vector<8x128xi32>
      %c0 = arith.constant 0 : index
      %c0_7 = arith.constant 0 : index
      %18 = vector.load %arg2[%c0, %c0_7] : memref<8x128xf32, #tpu.memory_space<vmem>>, vector<8x128xf32>
      %cst = arith.constant 1.000000e+00 : f32
      %19 = vector.broadcast %cst : f32 to vector<8x128xf32>
      %20 = arith.select %17, %18, %19 : vector<8x128xi1>, vector<8x128xf32>
      %c0_8 = arith.constant 0 : index
      %c0_9 = arith.constant 0 : index
      %21 = vector.load %arg3[%c0_8, %c0_9] : memref<8x128xf32, #tpu.memory_space<vmem>>, vector<8x128xf32>
      %cst_10 = arith.constant 1.000000e+00 : f32
      %22 = vector.broadcast %cst_10 : f32 to vector<8x128xf32>
      %23 = arith.select %17, %21, %22 : vector<8x128xi1>, vector<8x128xf32>
      %24 = math.log %20 : vector<8x128xf32>
      %cst_11 = arith.constant -1.000000e+02 : f32
      %25 = vector.broadcast %cst_11 : f32 to vector<8x128xf32>
      %26 = arith.maximumf %24, %25 : vector<8x128xf32>
      %cst_12 = arith.constant 1.000000e+00 : f32
      %27 = vector.broadcast %cst_12 : f32 to vector<8x128xf32>
      %28 = arith.subf %27, %20 : vector<8x128xf32>
      %29 = math.log %28 : vector<8x128xf32>
      %cst_13 = arith.constant -1.000000e+02 : f32
      %30 = vector.broadcast %cst_13 : f32 to vector<8x128xf32>
      %31 = arith.maximumf %29, %30 : vector<8x128xf32>
      %32 = arith.subf %26, %31 : vector<8x128xf32>
      %33 = arith.mulf %23, %32 : vector<8x128xf32>
      %34 = arith.addf %31, %33 : vector<8x128xf32>
      %cst_14 = arith.constant 0.000000e+00 : f32
      %35 = vector.broadcast %cst_14 : f32 to vector<8x128xf32>
      %36 = arith.subf %35, %34 : vector<8x128xf32>
      %c0_15 = arith.constant 0 : index
      %c0_16 = arith.constant 0 : index
      %37 = vector.load %arg4[%c0_15, %c0_16] : memref<8x128xf32, #tpu.memory_space<vmem>>, vector<8x128xf32>
      %38 = vector.shape_cast %36 : vector<8x128xf32> to vector<1x8x128xf32>
      %cst_17 = arith.constant dense<0.000000e+00> : vector<8x128xf32>
      %39 = vector.multi_reduction <add>, %38, %cst_17 [0] : vector<1x8x128xf32> to vector<8x128xf32>
      %40 = arith.addf %37, %39 : vector<8x128xf32>
      %c0_18 = arith.constant 0 : index
      %c0_19 = arith.constant 0 : index
      %41 = vector.load %arg4[%c0_18, %c0_19] : memref<8x128xf32, #tpu.memory_space<vmem>>, vector<8x128xf32>
      tpu.vector_store %arg4[%c0_18, %c0_19], %40 {strides = array<i32>} : memref<8x128xf32, #tpu.memory_space<vmem>>, vector<8x128xf32>,
    } else {
    }
    return
  }
  func.func @transform_0(%arg0: i32, %arg1: i32) -> (i32, i32) {
    %c1_i32 = arith.constant 1 : i32
    %0 = arith.muli %arg0, %c1_i32 : i32
    %1 = arith.addi %0, %arg1 : i32
    %c0_i32 = arith.constant 0 : i32
    %2 = arith.minsi %1, %c0_i32 : i32
    %c0_i32_0 = arith.constant 0 : i32
    %c0_i32_1 = arith.constant 0 : i32
    return %2, %c0_i32_0 : i32, i32
  }
  func.func @transform_1(%arg0: i32, %arg1: i32) -> (i32, i32) {
    %c1_i32 = arith.constant 1 : i32
    %0 = arith.muli %arg0, %c1_i32 : i32
    %1 = arith.addi %0, %arg1 : i32
    %c0_i32 = arith.constant 0 : i32
    %2 = arith.minsi %1, %c0_i32 : i32
    %c0_i32_0 = arith.constant 0 : i32
    %c0_i32_1 = arith.constant 0 : i32
    return %2, %c0_i32_0 : i32, i32
  }
  func.func @transform_2(%arg0: i32, %arg1: i32) -> (i32, i32) {
    %c0_i32 = arith.constant 0 : i32
    %c0_i32_0 = arith.constant 0 : i32
    return %arg0, %c0_i32 : i32, i32
  }
}

</mosaic_0001>

<llo_original>
// kernel: multibit_bce_loss.1
$region0: #{multibit_bce_loss.1}
  #allocation0 [shape = 'u32[]', space=smem, size = 0x4, offset = 0x4, fixed_abs, tag = 'smem constant byte address 0x4 - core index']
  #allocation1 [shape = 'u32[72,128]{1,0:T(1,128)}', space=vmem, size = 0x9000, scoped, tag = 'internal scratch']
  %s0 = inlined_call_operand.vmem [shape: f32[8,128], index: 0, kind: input, shape index: {}]
  %s1 = inlined_call_operand.vmem [shape: f32[8,128], index: 1, kind: input, shape index: {}]
  %s2 = inlined_call_operand.vmem [shape: f32[8,128], index: 2, kind: output, shape index: {}]
  %s3 = sld [smem:[#allocation0]]
  $region30: #{multibit_bce_loss.1} parent=0
    _
  %s5 = ssub.s32 1, %s3
  %s6 = scalar_select 0, %s5, %s3
  // Predicated region
  $region2: #{multibit_bce_loss.1} parent=0 // pred_check
    _
  $region3: #{multibit_bce_loss.1} parent=0 // pred_check_branch
    %8 = sbr.rel (0) target = $region5
  $region4: #{multibit_bce_loss.1} parent=0 // pred_region
    %s9 = sadd.s32 0, 0
    %p10 = scmp.lt.s32.totalorder %s9, 0
    %s11 = scalar_select %p10, %s9, 0
    %p12 = scmp.lt.s32.totalorder %s11, 0
    %s13 = scalar_select %p12, %s11, 0
    %s14 = smul.addr %s13, 8
    %s15 = scalar_lea.vmem %s0, %s14
    %s16 = sadd.s32 0, 0
    %p17 = scmp.lt.s32.totalorder %s16, 0
    %s18 = scalar_select %p17, %s16, 0
  $region5: #{multibit_bce_loss.1} parent=0 // pred_fallthru
    _
  // Predicated region
  $region6: #{multibit_bce_loss.1} parent=0 // pred_check
    _
  $region7: #{multibit_bce_loss.1} parent=0 // pred_check_branch
    %20 = sbr.rel (0) target = $region9
  $region8: #{multibit_bce_loss.1} parent=0 // pred_region
    %s21 = sadd.s32 0, 0
    %p22 = scmp.lt.s32.totalorder %s21, 0
    %s23 = scalar_select %p22, %s21, 0
    %p24 = scmp.lt.s32.totalorder %s23, 0
    %s25 = scalar_select %p24, %s23, 0
    %s26 = smul.addr %s25, 8
    %s27 = scalar_lea.vmem %s1, %s26
    %s28 = sadd.s32 0, 0
    %p29 = scmp.lt.s32.totalorder %s28, 0
    %s30 = scalar_select %p29, %s28, 0
  $region9: #{multibit_bce_loss.1} parent=0 // pred_fallthru
    _
  %s31 = sadd.s32 0, 0
  %p32 = scmp.lt.s32.totalorder %s31, 0
  %s33 = scalar_select %p32, %s31, 0
  %p34 = scmp.lt.s32.totalorder %s33, 0
  %s35 = scalar_select %p34, %s33, 0
  %s36 = smul.addr %s35, 8
  %s37 = scalar_lea.vmem %s0, %s36
  %s38 = sadd.s32 0, 0
  %p39 = scmp.lt.s32.totalorder %s38, 0
  %s40 = scalar_select %p39, %s38, 0
  %p41 = scmp.lt.s32.totalorder %s40, 0
  %s42 = scalar_select %p41, %s40, 0
  %s43 = smul.addr %s42, 8
  %s44 = scalar_lea.vmem %s1, %s43
  %s45 = sadd.s32 0, 0
  %p46 = scmp.lt.s32.totalorder %s45, 0
  %s47 = scalar_select %p46, %s45, 0
  %p48 = scmp.lt.s32.totalorder %s47, 0
  %s49 = scalar_select %p48, %s47, 0
  %s50 = smul.addr %s49, 8
  %s51 = scalar_lea.vmem %s0, %s50
  %s52 = sadd.s32 0, 0
  %p53 = scmp.lt.s32.totalorder %s52, 0
  %s54 = scalar_select %p53, %s52, 0
  %s55 = sadd.s32 0, 0
  %p56 = scmp.lt.s32.totalorder %s55, 0
  %s57 = scalar_select %p56, %s55, 0
  %p58 = scmp.lt.s32.totalorder %s57, 0
  %s59 = scalar_select %p58, %s57, 0
  %s60 = smul.addr %s59, 8
  %s61 = scalar_lea.vmem %s1, %s60
  %s62 = sadd.s32 0, 0
  %p63 = scmp.lt.s32.totalorder %s62, 0
  %s64 = scalar_select %p63, %s62, 0
  %p65 = scmp.eq.s32.totalorder 0, 0
  // Predicated region
  $region10: #{multibit_bce_loss.1} parent=0 // pred_check
    %p66 = pneg %p65
  $region11: #{multibit_bce_loss.1} parent=0 // pred_check_branch
    %68 = sbr.rel (%p66) target = $region13
  $region12: #{multibit_bce_loss.1} parent=0 // pred_region
    %69 = vst [vmem:[%s2] sm:$0xff] 0.0
  $region13: #{multibit_bce_loss.1} parent=0 // pred_fallthru
    _
  %s70 = sadd.s32 0, 0
  %s71 = smul.u32 %s70, 8
  %s72 = ssub.s32 8, %s71
  %p73 = scmp.ge.s32.totalorder %s72, 8
  // Predicated region
  $region14: #{multibit_bce_loss.1} parent=0 // pred_check
    %p74 = pneg %p73
  $region15: #{multibit_bce_loss.1} parent=0 // pred_check_branch
    %76 = sbr.rel (%p74) target = $region17
  $region16: #{multibit_bce_loss.1} parent=0 // pred_region
    %v77 = vld [vmem:[%s51] sm:$0xff]
    %v78 = vld [vmem:[%s61] sm:$0xff]
    %v79 = vlog2.pop %v77
    %v80 = vmul.f32 %v79, 0.6931472
    %v81 = vmax.f32 %v80, -100.0
    %v82 = vsub.f32 1.0, %v77
    %v83 = vlog2.pop %v82
    %v84 = vmul.f32 %v83, 0.6931472
    %v85 = vmax.f32 %v84, -100.0
    %v86 = vsub.f32 %v81, %v85
    %v87 = vmul.f32 %v78, %v86
    %v88 = vadd.f32 %v85, %v87
    %v89 = vsub.f32 0.0, %v88
    %v90 = vld [vmem:[%s2] sm:$0xff]
    %v91 = vadd.f32 %v89, 0.0
    %v92 = vadd.f32 %v90, %v91
    %93 = vst [vmem:[%s2] sm:$0xff] %v92
  $region17: #{multibit_bce_loss.1} parent=0 // pred_fallthru
    _
  %p94 = scmp.gt.s32.totalorder %s72, 0
  %p95 = scmp.lt.s32.totalorder %s72, 8
  %p96 = pnand %p94, %p95
  %p97 = pneg %p96
  // Predicated region
  $region18: #{multibit_bce_loss.1} parent=0 // pred_check
    _
  $region19: #{multibit_bce_loss.1} parent=0 // pred_check_branch
    %99 = sbr.rel (%p96) target = $region21
  $region20: #{multibit_bce_loss.1} parent=0 // pred_region
    %v100 = vlaneseq
    %v101 = vshrl.u32 %v100, 7
    %v102 = vstv %s72
    %vm103 = vcmp.lt.s32.totalorder %v101, %v102
    %v104 = vld [vmem:[%s51] sm:$0xff]
    %v105 = vsel %vm103, %v104, 1.0
    %v106 = vld [vmem:[%s61] sm:$0xff]
    %v107 = vsel %vm103, %v106, 1.0
    %v108 = vlog2.pop %v105
    %v109 = vmul.f32 %v108, 0.6931472
    %v110 = vmax.f32 %v109, -100.0
    %v111 = vsub.f32 1.0, %v105
    %v112 = vlog2.pop %v111
    %v113 = vmul.f32 %v112, 0.6931472
    %v114 = vmax.f32 %v113, -100.0
    %v115 = vsub.f32 %v110, %v114
    %v116 = vmul.f32 %v107, %v115
    %v117 = vadd.f32 %v114, %v116
    %v118 = vsub.f32 0.0, %v117
    %v119 = vld [vmem:[%s2] sm:$0xff]
    %v120 = vadd.f32 %v118, 0.0
    %v121 = vadd.f32 %v119, %v120
    %122 = vst [vmem:[%s2] sm:$0xff] %v121
  $region21: #{multibit_bce_loss.1} parent=0 // pred_fallthru
    _
  // Predicated region
  $region22: #{multibit_bce_loss.1} parent=0 // pred_check
    _
  $region23: #{multibit_bce_loss.1} parent=0 // pred_check_branch
    %124 = sbr.rel (0) target = $region25
  $region24: #{multibit_bce_loss.1} parent=0 // pred_region
    _
  $region25: #{multibit_bce_loss.1} parent=0 // pred_fallthru
    _
  // Predicated region
  $region26: #{multibit_bce_loss.1} parent=0 // pred_check
    _
  $region27: #{multibit_bce_loss.1} parent=0 // pred_check_branch
    %126 = sbr.rel (0) target = $region29
  $region28: #{multibit_bce_loss.1} parent=0 // pred_region
    _
  $region29: #{multibit_bce_loss.1} parent=0 // pred_fallthru
    _

</llo_original>
